<compile_context>
chip_gen: v5e
topology: v5e:2x2
jax: 0.10.0
libtpu: 0.0.40
codegen_flags: <defaults>
</compile_context>

<pallas_src>
import functools
import math

import numpy as np
import jax
import jax.numpy as jnp
from jax.experimental import pallas as pl
from jax.experimental.pallas import tpu as pltpu


def _round_up(x, m):
    return (x + m - 1) // m * m


def mdn3d_kernel(K, x_ref, w1_ref, b1_ref, w2_ref, b2_ref, out_ref):
    """One row-tile of the fused 4-head MDN MLP.

    x_ref   : (tm, D)            input rows (matmul dtype, e.g. bf16)
    w1_ref  : (D, 4*H_pad)       column-concat of the four heads' layer-1 weights
    b1_ref  : (1, 4*H_pad)       f32
    w2_ref  : (4*H_pad, C_pad)   block-diagonal layer-2 weights, zero-padded cols
    b2_ref  : (1, C_pad)         f32
    out_ref : (tm, C_pad)        lane-dense [pi | mu | sigma | rho | zero-pad], f32
    """
    x = x_ref[...]

    # Fused layer 1: one full-lane-width MXU matmul (bf16 operands, f32 acc) + ReLU.
    h = jnp.dot(x, w1_ref[...], preferred_element_type=jnp.float32) + b1_ref[...]
    h = jnp.maximum(h, 0.0)

    # Fused (block-diagonal) layer 2: one matmul -> all four heads' pre-activations.
    z = jnp.dot(h.astype(w2_ref.dtype), w2_ref[...],
                preferred_element_type=jnp.float32) + b2_ref[...]

    # In-layout masked epilogue: no slices, no concatenate, no relayouts.
    col = jax.lax.broadcasted_iota(jnp.int32, z.shape, 1)
    is_pi = col < K
    is_sigma = (col >= 4 * K) & (col < 7 * K)
    # (mu, rho and the zero pad lanes all take tanh; tanh(0)=0 keeps pad finite.)

    # pi head: softmax over the first K lanes via masked reductions.
    neg_big = jnp.float32(-1e30)
    m = jnp.max(jnp.where(is_pi, z, neg_big), axis=-1, keepdims=True)
    e = jnp.where(is_pi, jnp.exp(z - m), 0.0)
    denom = jnp.sum(e, axis=-1, keepdims=True)
    pi_vals = e / denom  # exact divide: rows sum to 1 for downstream sampling

    t = jnp.tanh(z)   # mu / rho lanes
    s = jnp.exp(z)    # sigma lanes (pi lanes may overflow; discarded by select)

    out_ref[...] = jnp.where(is_pi, pi_vals, jnp.where(is_sigma, s, t))


def make_params(key, input_dim, hidden, num_gaussians):
    """Deterministic parameter init mimicking nn.Linear's U(-1/sqrt(in), 1/sqrt(in))."""
    def linear(k, fan_in, fan_out):
        k1, k2 = jax.random.split(k)
        bound = 1.0 / math.sqrt(fan_in)
        w = jax.random.uniform(k1, (fan_in, fan_out), jnp.float32, -bound, bound)
        b = jax.random.uniform(k2, (1, fan_out), jnp.float32, -bound, bound)
        return w, b

    keys = jax.random.split(key, 9)
    params = {}
    params["pi_w1"], params["pi_b1"] = linear(keys[0], input_dim, hidden)
    params["pi_w2"], params["pi_b2"] = linear(keys[1], hidden, num_gaussians)
    params["mu_w1"], params["mu_b1"] = linear(keys[2], input_dim, hidden)
    params["mu_w2"], params["mu_b2"] = linear(keys[3], hidden, 3 * num_gaussians)
    # self.mu[-1].bias.data.copy_(torch.rand_like(...)) -> U(0, 1)
    params["mu_b2"] = jax.random.uniform(keys[8], (1, 3 * num_gaussians), jnp.float32, 0.0, 1.0)
    params["st_w1"], params["st_b1"] = linear(keys[4], input_dim, hidden)
    params["st_w2"], params["st_b2"] = linear(keys[5], hidden, 3 * num_gaussians)
    params["rh_w1"], params["rh_b1"] = linear(keys[6], input_dim, hidden)
    params["rh_w2"], params["rh_b2"] = linear(keys[7], hidden, 3 * num_gaussians)
    return params


def pack_params(params, num_gaussians, h_align=128, lane=128):
    """Concatenate the 16 per-head tensors into 4 packed arrays (host-side glue).

    Each head's hidden width is zero-padded to H_pad (multiple of 128) and the
    output columns are zero-padded to C_pad (multiple of 128) so both matmuls
    and the output store are lane-dense / MXU-aligned.
    """
    K = num_gaussians
    H = params["pi_w1"].shape[1]
    H_pad = _round_up(H, h_align)
    C = 10 * K
    C_pad = _round_up(C, lane)

    def pad_cols(a, new_cols):
        return jnp.pad(a, ((0, 0), (0, new_cols - a.shape[1])))

    heads = ("pi", "mu", "st", "rh")
    w1_all = jnp.concatenate([pad_cols(params[h + "_w1"], H_pad) for h in heads], axis=1)
    b1_all = jnp.concatenate([pad_cols(params[h + "_b1"], H_pad) for h in heads], axis=1)

    col_sizes = (K, 3 * K, 3 * K, 3 * K)
    w2_all = jnp.zeros((4 * H_pad, C_pad), jnp.float32)
    b2_all = jnp.zeros((1, C_pad), jnp.float32)
    row, col = 0, 0
    for name, csz in zip(heads, col_sizes):
        w2_all = w2_all.at[row:row + H, col:col + csz].set(params[name + "_w2"])
        b2_all = b2_all.at[:, col:col + csz].set(params[name + "_b2"])
        row += H_pad
        col += csz
    return w1_all, b1_all, w2_all, b2_all, H_pad, C_pad


def cal_forward_vector(label_hei, label_wid):
    # Plain-JAX glue reproducing MDN3D.cal_forward_vector (not used in forward()).
    x_range = np.arange(-label_wid / 2, label_wid / 2)
    y_range = np.arange(-label_hei / 2, label_hei / 2)
    tx, ty = np.meshgrid(x_range, y_range)
    lon = tx.astype(float) / label_wid * 2 * np.pi
    lat = ty.astype(float) / label_hei * np.pi
    x = (np.cos(lat) * np.cos(lon)).reshape(1, 1, -1)
    y = (np.cos(lat) * np.sin(lon)).reshape(1, 1, -1)
    z = np.sin(lat).reshape(1, 1, -1)
    return jnp.asarray(np.concatenate([x, y, z], axis=1), dtype=jnp.float32)


def mdn3d_forward(x, params, num_gaussians, tm=512, matmul_dtype=jnp.bfloat16):
    """x: [B, N, input_dim] float32.  Returns (pi, mu, sigma, rho) as in MDN3D.forward."""
    B, N, D = x.shape
    K = num_gaussians
    M = B * N

    w1_all, b1_all, w2_all, b2_all, H_pad, C_pad = pack_params(params, K)
    # bf16 (or requested dtype) matmul operands; f32 accumulate + f32 biases/activations.
    w1_all = w1_all.astype(matmul_dtype)
    w2_all = w2_all.astype(matmul_dtype)
    x2d = x.reshape(M, D).astype(matmul_dtype)

    # Row tiling: big tiles amortize ~0.35us/grid-step; tm kept a multiple of 16
    # (bf16 sublane packing) and defaults to 512 (multiple of 256 for v6e/v7x MXU).
    tm = int(min(tm, _round_up(M, 16)))
    tm = max(16, _round_up(tm, 16))
    M_pad = _round_up(M, tm)
    if M_pad != M:
        x2d = jnp.pad(x2d, ((0, M_pad - M), (0, 0)))

    # VMEM budget: single-buffered weights + double-buffered x/out streams + the
    # (tm, 4*H_pad) h temp and epilogue temps, with headroom; capped for v7x (64 MiB).
    w_bytes = int((w1_all.size + w2_all.size) * w1_all.dtype.itemsize
                  + (b1_all.size + b2_all.size) * 4)
    stream_bytes = int(2 * tm * D * x2d.dtype.itemsize + 2 * tm * C_pad * 4)
    temp_bytes = int(tm * 4 * H_pad * (4 + w1_all.dtype.itemsize) + 6 * tm * C_pad * 4)
    vmem_limit = int(1.5 * (w_bytes + stream_bytes + temp_bytes)) + (8 << 20)
    vmem_limit = max(32 << 20, min(vmem_limit, 64 << 20))

    flops = int(2 * M_pad * (D * 4 * H_pad + 4 * H_pad * C_pad))
    transcendentals = int(3 * M_pad * C_pad)
    bytes_accessed = int(M_pad * D * x2d.dtype.itemsize + w_bytes + M_pad * C_pad * 4)

    kernel = functools.partial(mdn3d_kernel, K)

    out2d = pl.pallas_call(
        kernel,
        out_shape=jax.ShapeDtypeStruct((M_pad, C_pad), jnp.float32),
        grid_spec=pltpu.PrefetchScalarGridSpec(
            num_scalar_prefetch=0,
            grid=(M_pad // tm,),
            in_specs=[
                pl.BlockSpec((tm, D), lambda i: (i, 0)),  # x rows (streamed)
                # Grid-invariant params: constant index_map + single buffer.
                pl.BlockSpec((D, 4 * H_pad), lambda i: (0, 0),
                             pipeline_mode=pl.Buffered(1)),
                pl.BlockSpec((1, 4 * H_pad), lambda i: (0, 0),
                             pipeline_mode=pl.Buffered(1)),
                pl.BlockSpec((4 * H_pad, C_pad), lambda i: (0, 0),
                             pipeline_mode=pl.Buffered(1)),
                pl.BlockSpec((1, C_pad), lambda i: (0, 0),
                             pipeline_mode=pl.Buffered(1)),
            ],
            out_specs=pl.BlockSpec((tm, C_pad), lambda i: (i, 0)),
        ),
        compiler_params=pltpu.CompilerParams(
            dimension_semantics=("parallel",),
            vmem_limit_bytes=vmem_limit,
        ),
        cost_estimate=pl.CostEstimate(
            flops=flops,
            transcendentals=transcendentals,
            bytes_accessed=bytes_accessed,
        ),
    )(x2d, w1_all, b1_all, w2_all, b2_all)

    # Strip row padding and the zero-padded lanes, then split heads (host glue).
    out2d = out2d[:M]
    pi = out2d[:, :K].reshape(B, N, K)
    mu = out2d[:, K:4 * K].reshape(B, N, K, 3)
    sigma = out2d[:, 4 * K:7 * K].reshape(B, N, K, 3)
    rho = out2d[:, 7 * K:10 * K].reshape(B, N, K, 3)
    return pi, mu, sigma, rho


def mdn3d_forward_ref(x, params, num_gaussians):
    """Pure-JAX reference for correctness check."""
    B, N, D = x.shape
    x2d = x.reshape(B * N, D)

    def head(p1w, p1b, p2w, p2b):
        h = jnp.maximum(x2d @ p1w + p1b, 0.0)
        return h @ p2w + p2b

    logits = head(params["pi_w1"], params["pi_b1"], params["pi_w2"], params["pi_b2"])
    pi = jax.nn.softmax(logits, axis=-1)
    mu = jnp.tanh(head(params["mu_w1"], params["mu_b1"], params["mu_w2"], params["mu_b2"]))
    sigma = jnp.exp(head(params["st_w1"], params["st_b1"], params["st_w2"], params["st_b2"]))
    rho = jnp.tanh(head(params["rh_w1"], params["rh_b1"], params["rh_w2"], params["rh_b2"]))
    K = num_gaussians
    return (pi.reshape(B, N, K), mu.reshape(B, N, K, 3),
            sigma.reshape(B, N, K, 3), rho.reshape(B, N, K, 3))


if __name__ == "__main__":
    # Small, forward-consistent shapes
    B, N = 2, 8
    input_dim = 32
    hidden = 32
    num_gaussians = 4
    action_map_size = (8, 16)

    key = jax.random.PRNGKey(0)
    kx, kp = jax.random.split(key)
    x = jax.random.normal(kx, (B, N, input_dim), dtype=jnp.float32)
    params = make_params(kp, input_dim, hidden, num_gaussians)

    # xyz_t constant from __init__ (not used by forward; sampling path only)
    xyz_t = cal_forward_vector(action_map_size[0], action_map_size[1])
    # TODO(synk): torch.multinomial-based sample_prob has no clean Pallas equivalent; not implemented.

    # Pure-JAX reference.
    pi_r, mu_r, sg_r, rh_r = mdn3d_forward_ref(x, params, num_gaussians)

    # 1) f32 matmul path: tight check of the kernel structure (masks, padding, softmax).
    pi32, mu32, sg32, rh32 = mdn3d_forward(x, params, num_gaussians,
                                           matmul_dtype=jnp.float32)
    jax.block_until_ready((pi32, mu32, sg32, rh32))
    for a, b in ((pi32, pi_r), (mu32, mu_r), (sg32, sg_r), (rh32, rh_r)):
        np.testing.assert_allclose(np.asarray(a), np.asarray(b), rtol=1e-5, atol=1e-5)

    # 2) bf16 matmul path (the performance configuration): looser tolerance.
    pi, mu, sigma, rho = mdn3d_forward(x, params, num_gaussians)
    jax.block_until_ready((pi, mu, sigma, rho))
    for a, b in ((pi, pi_r), (mu, mu_r), (sigma, sg_r), (rho, rh_r)):
        np.testing.assert_allclose(np.asarray(a), np.asarray(b), rtol=5e-2, atol=2e-2)

    assert pi.shape == (B, N, num_gaussians)
    assert mu.shape == (B, N, num_gaussians, 3)
    assert sigma.shape == (B, N, num_gaussians, 3)
    assert rho.shape == (B, N, num_gaussians, 3)
    assert xyz_t.shape == (1, 3, action_map_size[0] * action_map_size[1])

    print("KERNEL_OK")
</pallas_src>

<mosaic_0001>
module attributes {stable_mosaic.version = 11 : i64} {
  func.func @mdn3d_kernel(%arg0: i32, %arg1: memref<16x32xf32, #tpu.memory_space<vmem>>, %arg2: memref<32x512xf32, #tpu.memory_space<vmem>>, %arg3: memref<1x512xf32, #tpu.memory_space<vmem>>, %arg4: memref<512x128xf32, #tpu.memory_space<vmem>>, %arg5: memref<1x128xf32, #tpu.memory_space<vmem>>, %arg6: memref<16x128xf32, #tpu.memory_space<vmem>>) attributes {dimension_semantics = [#tpu.dimension_semantics<parallel>], iteration_bounds = array<i64: 1>, scalar_prefetch = 0 : i64, scratch_operands = 0 : i64, tpu.core_type = #tpu.core_type<tc>, window_params = [{transform_indices = @transform_0, window_bounds = array<i64: 16, 32>}, {pipeline_mode = #tpu.pipeline_mode<synchronous>, transform_indices = @transform_1, window_bounds = array<i64: 32, 512>}, {pipeline_mode = #tpu.pipeline_mode<synchronous>, transform_indices = @transform_2, window_bounds = array<i64: 1, 512>}, {pipeline_mode = #tpu.pipeline_mode<synchronous>, transform_indices = @transform_3, window_bounds = array<i64: 512, 128>}, {pipeline_mode = #tpu.pipeline_mode<synchronous>, transform_indices = @transform_4, window_bounds = array<i64: 1, 128>}, {transform_indices = @transform_5, window_bounds = array<i64: 16, 128>}]} {
    %c0 = arith.constant 0 : index
    %c0_0 = arith.constant 0 : index
    %0 = vector.load %arg1[%c0, %c0_0] : memref<16x32xf32, #tpu.memory_space<vmem>>, vector<16x32xf32>
    %c0_1 = arith.constant 0 : index
    %c0_2 = arith.constant 0 : index
    %1 = vector.load %arg2[%c0_1, %c0_2] : memref<32x512xf32, #tpu.memory_space<vmem>>, vector<32x512xf32>
    %cst = arith.constant dense<0.000000e+00> : vector<16x512xf32>
    %2 = tpu.matmul %0, %1, %cst {dimension_numbers = #tpu.dot_dimension_numbers<[1], [0], [0], [1], [0, 0, 1, 1], [], []>} : vector<16x32xf32>, vector<32x512xf32>, vector<16x512xf32> -> vector<16x512xf32>
    %c0_3 = arith.constant 0 : index
    %c0_4 = arith.constant 0 : index
    %3 = vector.load %arg3[%c0_3, %c0_4] : memref<1x512xf32, #tpu.memory_space<vmem>>, vector<1x512xf32>
    %4 = vector.broadcast %3 : vector<1x512xf32> to vector<16x512xf32>
    %5 = arith.addf %2, %4 : vector<16x512xf32>
    %cst_5 = arith.constant 0.000000e+00 : f32
    %6 = vector.broadcast %cst_5 : f32 to vector<16x512xf32>
    %7 = arith.maximumf %5, %6 : vector<16x512xf32>
    %c0_6 = arith.constant 0 : index
    %c0_7 = arith.constant 0 : index
    %8 = vector.load %arg4[%c0_6, %c0_7] : memref<512x128xf32, #tpu.memory_space<vmem>>, vector<512x128xf32>
    %cst_8 = arith.constant dense<0.000000e+00> : vector<16x128xf32>
    %9 = tpu.matmul %7, %8, %cst_8 {dimension_numbers = #tpu.dot_dimension_numbers<[1], [0], [0], [1], [0, 0, 1, 1], [], []>} : vector<16x512xf32>, vector<512x128xf32>, vector<16x128xf32> -> vector<16x128xf32>
    %c0_9 = arith.constant 0 : index
    %c0_10 = arith.constant 0 : index
    %10 = vector.load %arg5[%c0_9, %c0_10] : memref<1x128xf32, #tpu.memory_space<vmem>>, vector<1x128xf32>
    %11 = vector.broadcast %10 : vector<1x128xf32> to vector<16x128xf32>
    %12 = arith.addf %9, %11 : vector<16x128xf32>
    %13 = tpu.iota {dimensions = array<i32: 1>} : vector<16x128xi32>
    %c4_i32 = arith.constant 4 : i32
    %14 = vector.broadcast %c4_i32 : i32 to vector<16x128xi32>
    %15 = arith.cmpi slt, %13, %14 : vector<16x128xi32>
    %c16_i32 = arith.constant 16 : i32
    %16 = vector.broadcast %c16_i32 : i32 to vector<16x128xi32>
    %17 = arith.cmpi sge, %13, %16 : vector<16x128xi32>
    %c28_i32 = arith.constant 28 : i32
    %18 = vector.broadcast %c28_i32 : i32 to vector<16x128xi32>
    %19 = arith.cmpi slt, %13, %18 : vector<16x128xi32>
    %20 = arith.andi %17, %19 : vector<16x128xi1>
    %cst_11 = arith.constant -1.000000e+30 : f32
    %21 = vector.broadcast %cst_11 : f32 to vector<16x128xf32>
    %22 = arith.select %15, %12, %21 : vector<16x128xi1>, vector<16x128xf32>
    %cst_12 = arith.constant dense<0xFF800000> : vector<16xf32>
    %23 = vector.multi_reduction <maximumf>, %22, %cst_12 [1] : vector<16x128xf32> to vector<16xf32>
    %24 = vector.shape_cast %23 : vector<16xf32> to vector<16x1xf32>
    %25 = vector.broadcast %24 : vector<16x1xf32> to vector<16x128xf32>
    %26 = arith.subf %12, %25 : vector<16x128xf32>
    %27 = math.exp %26 : vector<16x128xf32>
    %cst_13 = arith.constant 0.000000e+00 : f32
    %28 = vector.broadcast %cst_13 : f32 to vector<16x128xf32>
    %29 = arith.select %15, %27, %28 : vector<16x128xi1>, vector<16x128xf32>
    %cst_14 = arith.constant dense<0.000000e+00> : vector<16xf32>
    %30 = vector.multi_reduction <add>, %29, %cst_14 [1] : vector<16x128xf32> to vector<16xf32>
    %31 = vector.shape_cast %30 : vector<16xf32> to vector<16x1xf32>
    %32 = vector.broadcast %31 : vector<16x1xf32> to vector<16x128xf32>
    %33 = arith.divf %29, %32 : vector<16x128xf32>
    %34 = math.tanh %12 : vector<16x128xf32>
    %35 = math.exp %12 : vector<16x128xf32>
    %36 = arith.select %20, %35, %34 : vector<16x128xi1>, vector<16x128xf32>
    %37 = arith.select %15, %33, %36 : vector<16x128xi1>, vector<16x128xf32>
    %c0_15 = arith.constant 0 : index
    %c0_16 = arith.constant 0 : index
    %38 = vector.load %arg6[%c0_15, %c0_16] : memref<16x128xf32, #tpu.memory_space<vmem>>, vector<16x128xf32>
    tpu.vector_store %arg6[%c0_15, %c0_16], %37 {strides = array<i32>} : memref<16x128xf32, #tpu.memory_space<vmem>>, vector<16x128xf32>,
    return
  }
  func.func @transform_0(%arg0: i32) -> (i32, i32) {
    %c0_i32 = arith.constant 0 : i32
    %c0_i32_0 = arith.constant 0 : i32
    return %arg0, %c0_i32 : i32, i32
  }
  func.func @transform_1(%arg0: i32) -> (i32, i32) {
    %c0_i32 = arith.constant 0 : i32
    %c0_i32_0 = arith.constant 0 : i32
    %c0_i32_1 = arith.constant 0 : i32
    return %c0_i32, %c0_i32_0 : i32, i32
  }
  func.func @transform_2(%arg0: i32) -> (i32, i32) {
    %c0_i32 = arith.constant 0 : i32
    %c0_i32_0 = arith.constant 0 : i32
    %c0_i32_1 = arith.constant 0 : i32
    return %c0_i32, %c0_i32_0 : i32, i32
  }
  func.func @transform_3(%arg0: i32) -> (i32, i32) {
    %c0_i32 = arith.constant 0 : i32
    %c0_i32_0 = arith.constant 0 : i32
    %c0_i32_1 = arith.constant 0 : i32
    return %c0_i32, %c0_i32_0 : i32, i32
  }
  func.func @transform_4(%arg0: i32) -> (i32, i32) {
    %c0_i32 = arith.constant 0 : i32
    %c0_i32_0 = arith.constant 0 : i32
    %c0_i32_1 = arith.constant 0 : i32
    return %c0_i32, %c0_i32_0 : i32, i32
  }
  func.func @transform_5(%arg0: i32) -> (i32, i32) {
    %c0_i32 = arith.constant 0 : i32
    %c0_i32_0 = arith.constant 0 : i32
    return %arg0, %c0_i32 : i32, i32
  }
}

</mosaic_0001>

<llo_original>
// kernel: tpu_custom_call.1
$region0: #{tpu_custom_call.1}
  #allocation0 [shape = 'u32[]', space=smem, size = 0x4, offset = 0x4, fixed_abs, tag = 'smem constant byte address 0x4 - core index']
  #allocation1 [shape = 'u32[72,128]{1,0:T(1,128)}', space=vmem, size = 0x9000, scoped, tag = 'internal scratch']
  %s0 = inlined_call_operand.hbm [shape: f32[16,32], index: 0, kind: input, shape index: {}]
  %s1 = inlined_call_operand.hbm [shape: f32[32,512], index: 1, kind: input, shape index: {}]
  %s2 = inlined_call_operand.hbm [shape: f32[1,512], index: 2, kind: input, shape index: {}]
  %s3 = inlined_call_operand.hbm [shape: f32[512,128], index: 3, kind: input, shape index: {}]
  %s4 = inlined_call_operand.vmem [shape: f32[1,128], index: 4, kind: input, shape index: {}]
  %s5 = inlined_call_operand.hbm [shape: f32[16,128], index: 5, kind: output, shape index: {}]
  %s6 = sld [smem:[#allocation0]]
  $region46: #{tpu_custom_call.1} parent=0
    _
  %s8 = ssub.s32 1, %s6
  %s9 = scalar_select 0, %s8, %s6
  $region1: #{tpu_custom_call.1} parent=0
    #allocation2 [shape = 'u8[8192]{0}', space=vmem, size = 0x2000, scoped, tag = 'input window, operand 0, single buffered']
    #allocation3 [shape = 's32[1]{0}', space=sflag, size = 0x4, scoped, tag = 'scoped memory for tpu_custom_call.1']
    #allocation4 [shape = 's32[1]{0}', space=sflag, size = 0x4, scoped, tag = 'scoped memory for tpu_custom_call.1']
    #allocation5 [shape = 'u8[65536]{0}', space=vmem, size = 0x10000, scoped, tag = 'input window, operand 1, single buffered']
    #allocation6 [shape = 's32[1]{0}', space=sflag, size = 0x4, scoped, tag = 'scoped memory for tpu_custom_call.1']
    #allocation7 [shape = 'u8[2048]{0}', space=vmem, size = 0x800, scoped, tag = 'input window, operand 2, single buffered']
    #allocation8 [shape = 'u8[262144]{0}', space=vmem, size = 0x40000, scoped, tag = 'input window, operand 3, single buffered']
    #allocation9 [shape = 's32[1]{0}', space=sflag, size = 0x4, scoped, tag = 'scoped memory for tpu_custom_call.1']
    #allocation10 [shape = 'u8[8192]{0}', space=vmem, size = 0x2000, scoped, tag = 'output window, operand 0, single buffered']
    %10 = vsyncpa [#allocation3], 0
    %11 = vsyncpa [#allocation6], 0
    %12 = vsyncpa [#allocation9], 0
    %13 = vsyncpa [#allocation4], 0
    // Predicated region
    $region2: #{tpu_custom_call.1} parent=1 // pred_check
      _
    $region3: #{tpu_custom_call.1} parent=1 // pred_check_branch
      %15 = sbr.rel (0) target = $region5
    $region4: #{tpu_custom_call.1} parent=1 // pred_region
      %17 = vsyncadd [#allocation3], 0
      %s18 = sshll.u32 %s0, 4
      %s19 = int_to_ptr.hbm [resolvable:$true] %s18
      %s20 = sshll.u32 [#allocation2], 4
      %s21 = int_to_ptr.vmem [resolvable:$true] %s20
      %26 = dma.hbm_to_vmem [thread:$0]  %s19, 256, %s21, [#allocation3], 128, 128, 8
    $region5: #{tpu_custom_call.1} parent=1 // pred_fallthru
      _
    // Predicated region
    $region6: #{tpu_custom_call.1} parent=1 // pred_check
      _
    $region7: #{tpu_custom_call.1} parent=1 // pred_check_branch
      %28 = sbr.rel (0) target = $region9
    $region8: #{tpu_custom_call.1} parent=1 // pred_region
      %30 = vsyncadd [#allocation6], 0
      %s31 = sshll.u32 %s1, 4
      %s32 = int_to_ptr.hbm [resolvable:$true] %s31
      %s33 = sshll.u32 [#allocation5], 4
      %s34 = int_to_ptr.vmem [resolvable:$true] %s33
      %39 = dma.hbm_to_vmem [thread:$0]  %s32, 2048, %s34, [#allocation6], 512, 512, 32
    $region9: #{tpu_custom_call.1} parent=1 // pred_fallthru
      _
    // Predicated region
    $region10: #{tpu_custom_call.1} parent=1 // pred_check
      _
    $region11: #{tpu_custom_call.1} parent=1 // pred_check_branch
      %41 = sbr.rel (0) target = $region13
    $region12: #{tpu_custom_call.1} parent=1 // pred_region
      %43 = vsyncadd [#allocation6], 0
      %s45 = sshll.u32 %s2, 4
      %s46 = int_to_ptr.hbm [resolvable:$true] %s45
      %s47 = sshll.u32 [#allocation7], 4
      %s48 = int_to_ptr.vmem [resolvable:$true] %s47
      %50 = dma.hbm_to_vmem [thread:$0]  %s46, 64, %s48, [#allocation6]
    $region13: #{tpu_custom_call.1} parent=1 // pred_fallthru
      _
    // Predicated region
    $region14: #{tpu_custom_call.1} parent=1 // pred_check
      _
    $region15: #{tpu_custom_call.1} parent=1 // pred_check_branch
      %52 = sbr.rel (0) target = $region17
    $region16: #{tpu_custom_call.1} parent=1 // pred_region
      %54 = vsyncadd [#allocation9], 0
      %s55 = sshll.u32 %s3, 4
      %s56 = int_to_ptr.hbm [resolvable:$true] %s55
      %s57 = sshll.u32 [#allocation8], 4
      %s58 = int_to_ptr.vmem [resolvable:$true] %s57
      %63 = dma.hbm_to_vmem [thread:$0]  %s56, 8192, %s58, [#allocation9], 128, 128, 8
    $region17: #{tpu_custom_call.1} parent=1 // pred_fallthru
      _
    // Predicated region
    $region18: #{tpu_custom_call.1} parent=1 // pred_check
      _
    $region19: #{tpu_custom_call.1} parent=1 // pred_check_branch
      %65 = sbr.rel (0) target = $region21
    $region20: #{tpu_custom_call.1} parent=1 // pred_region
      _
    $region21: #{tpu_custom_call.1} parent=1 // pred_fallthru
      _
    // Predicated region
    $region22: #{tpu_custom_call.1} parent=1 // pred_check
      _
    $region23: #{tpu_custom_call.1} parent=1 // pred_check_branch
      %67 = sbr.rel (0) target = $region25
    $region24: #{tpu_custom_call.1} parent=1 // pred_region
      %69 = dma.done [#allocation3], 256
    $region25: #{tpu_custom_call.1} parent=1 // pred_fallthru
      _
    // Predicated region
    $region26: #{tpu_custom_call.1} parent=1 // pred_check
      _
    $region27: #{tpu_custom_call.1} parent=1 // pred_check_branch
      %71 = sbr.rel (0) target = $region29
    $region28: #{tpu_custom_call.1} parent=1 // pred_region
      %73 = dma.done [#allocation6], 2048
    $region29: #{tpu_custom_call.1} parent=1 // pred_fallthru
      _
    // Predicated region
    $region30: #{tpu_custom_call.1} parent=1 // pred_check
      _
    $region31: #{tpu_custom_call.1} parent=1 // pred_check_branch
      %75 = sbr.rel (0) target = $region33
    $region32: #{tpu_custom_call.1} parent=1 // pred_region
      %77 = dma.done [#allocation6], 64
    $region33: #{tpu_custom_call.1} parent=1 // pred_fallthru
      _
    // Predicated region
    $region34: #{tpu_custom_call.1} parent=1 // pred_check
      _
    $region35: #{tpu_custom_call.1} parent=1 // pred_check_branch
      %79 = sbr.rel (0) target = $region37
    $region36: #{tpu_custom_call.1} parent=1 // pred_region
      %81 = dma.done [#allocation9], 8192
    $region37: #{tpu_custom_call.1} parent=1 // pred_fallthru
      _
    %v82 = vld [vmem:[#allocation2] sm:$0xff]
    %v83 = vld [vmem:[#allocation2 + $0x8] sm:$0xff]
    %v84 = vld [vmem:[#allocation5] sm:$0xff]
    %v85 = vld [vmem:[#allocation5 + $0x8] sm:$0xff]
    %v86 = vld [vmem:[#allocation5 + $0x10] sm:$0xff]
    %v87 = vld [vmem:[#allocation5 + $0x18] sm:$0xff]
    %v88 = vld [vmem:[#allocation5 + $0x20] sm:$0xff]
    %v89 = vld [vmem:[#allocation5 + $0x28] sm:$0xff]
    %v90 = vld [vmem:[#allocation5 + $0x30] sm:$0xff]
    %v91 = vld [vmem:[#allocation5 + $0x38] sm:$0xff]
    %v92 = vld [vmem:[#allocation5 + $0x40] sm:$0xff]
    %v93 = vld [vmem:[#allocation5 + $0x48] sm:$0xff]
    %v94 = vld [vmem:[#allocation5 + $0x50] sm:$0xff]
    %v95 = vld [vmem:[#allocation5 + $0x58] sm:$0xff]
    %v96 = vld [vmem:[#allocation5 + $0x60] sm:$0xff]
    %v97 = vld [vmem:[#allocation5 + $0x68] sm:$0xff]
    %v98 = vld [vmem:[#allocation5 + $0x70] sm:$0xff]
    %v99 = vld [vmem:[#allocation5 + $0x78] sm:$0xff]
    %v100 = vld [vmem:[#allocation7] sm:$0xf]
    %v102 = vperm.slane %v100, 0
    %v103 = vperm.slane %v100, 1
    %v104 = vperm.slane %v100, 2
    %v105 = vperm.slane %v100, 3
    %vm110 = vcmask 261120
    %v112 = vsel %vm110, %v82, 0
    %v115 = vsel %vm110, %v83, 0
    %117 = vmatpush.msra.mxu0 0.0
    %118 = vmatpush.msra.mxu0 0.0
    %119 = vmatpush.msra.mxu0 0.0
    %120 = vmatpush.msra.mxu0 0.0
    %121 = vmatpush.msra.mxu0 0.0
    %122 = vmatpush.msra.mxu0 0.0
    %123 = vmatpush.msra.mxu0 0.0
    %124 = vmatpush.msra.mxu0 0.0
    %125 = vmatpush.msra.mxu0 0.0
    %126 = vmatpush.msra.mxu0 0.0
    %127 = vmatpush.msra.mxu0 0.0
    %128 = vmatpush.msra.mxu0 0.0
    %129 = vmatpush.msra.mxu0 %v96
    %130 = vmatpush.msra.mxu0 %v92
    %131 = vmatpush.msra.mxu0 %v88
    %132 = vmatpush.msra.mxu0 %v84
    %133 = vmatmul.f32.gmra.mxu0 %v112
    %v134 = vpop.f32.mrf.mxu0
    %v135 = vadd.f32 %v102, %v134
    %136 = vmatmul.f32.gmra.mxu0 %v115
    %v137 = vpop.f32.mrf.mxu0
    %v138 = vadd.f32 %v102, %v137
    %139 = vdwg.mxu0
    %140 = vmatpush.msra.mxu0 0.0
    %141 = vmatpush.msra.mxu0 0.0
    %142 = vmatpush.msra.mxu0 0.0
    %143 = vmatpush.msra.mxu0 0.0
    %144 = vmatpush.msra.mxu0 0.0
    %145 = vmatpush.msra.mxu0 0.0
    %146 = vmatpush.msra.mxu0 0.0
    %147 = vmatpush.msra.mxu0 0.0
    %148 = vmatpush.msra.mxu0 0.0
    %149 = vmatpush.msra.mxu0 0.0
    %150 = vmatpush.msra.mxu0 0.0
    %151 = vmatpush.msra.mxu0 0.0
    %152 = vmatpush.msra.mxu0 %v97
    %153 = vmatpush.msra.mxu0 %v93
    %154 = vmatpush.msra.mxu0 %v89
    %155 = vmatpush.msra.mxu0 %v85
    %156 = vmatmul.f32.gmra.mxu0 %v112
    %v157 = vpop.f32.mrf.mxu0
    %v158 = vadd.f32 %v103, %v157
    %159 = vmatmul.f32.gmra.mxu0 %v115
    %v160 = vpop.f32.mrf.mxu0
    %v161 = vadd.f32 %v103, %v160
    %162 = vdwg.mxu0
    %163 = vmatpush.msra.mxu0 0.0
    %164 = vmatpush.msra.mxu0 0.0
    %165 = vmatpush.msra.mxu0 0.0
    %166 = vmatpush.msra.mxu0 0.0
    %167 = vmatpush.msra.mxu0 0.0
    %168 = vmatpush.msra.mxu0 0.0
    %169 = vmatpush.msra.mxu0 0.0
    %170 = vmatpush.msra.mxu0 0.0
    %171 = vmatpush.msra.mxu0 0.0
    %172 = vmatpush.msra.mxu0 0.0
    %173 = vmatpush.msra.mxu0 0.0
    %174 = vmatpush.msra.mxu0 0.0
    %175 = vmatpush.msra.mxu0 %v98
    %176 = vmatpush.msra.mxu0 %v94
    %177 = vmatpush.msra.mxu0 %v90
    %178 = vmatpush.msra.mxu0 %v86
    %179 = vmatmul.f32.gmra.mxu0 %v112
    %v180 = vpop.f32.mrf.mxu0
    %v181 = vadd.f32 %v104, %v180
    %182 = vmatmul.f32.gmra.mxu0 %v115
    %v183 = vpop.f32.mrf.mxu0
    %v184 = vadd.f32 %v104, %v183
    %185 = vdwg.mxu0
    %186 = vmatpush.msra.mxu0 0.0
    %187 = vmatpush.msra.mxu0 0.0
    %188 = vmatpush.msra.mxu0 0.0
    %189 = vmatpush.msra.mxu0 0.0
    %190 = vmatpush.msra.mxu0 0.0
    %191 = vmatpush.msra.mxu0 0.0
    %192 = vmatpush.msra.mxu0 0.0
    %193 = vmatpush.msra.mxu0 0.0
    %194 = vmatpush.msra.mxu0 0.0
    %195 = vmatpush.msra.mxu0 0.0
    %196 = vmatpush.msra.mxu0 0.0
    %197 = vmatpush.msra.mxu0 0.0
    %198 = vmatpush.msra.mxu0 %v99
    %199 = vmatpush.msra.mxu0 %v95
    %200 = vmatpush.msra.mxu0 %v91
    %201 = vmatpush.msra.mxu0 %v87
    %202 = vmatmul.f32.gmra.mxu0 %v112
    %v203 = vpop.f32.mrf.mxu0
    %v204 = vadd.f32 %v105, %v203
    %205 = vmatmul.f32.gmra.mxu0 %v115
    %v206 = vpop.f32.mrf.mxu0
    %v207 = vadd.f32 %v105, %v206
    %208 = vdwg.mxu0
    %v209 = vmax.f32 %v135, 0.0
    %v210 = vmax.f32 %v158, 0.0
    %v211 = vmax.f32 %v181, 0.0
    %v212 = vmax.f32 %v204, 0.0
    %v213 = vmax.f32 %v138, 0.0
    %v214 = vmax.f32 %v161, 0.0
    %v215 = vmax.f32 %v184, 0.0
    %v216 = vmax.f32 %v207, 0.0
    %v217 = vld [vmem:[#allocation8] sm:$0xff]
    %v218 = vld [vmem:[#allocation8 + $0x8] sm:$0xff]
    %v219 = vld [vmem:[#allocation8 + $0x10] sm:$0xff]
    %v220 = vld [vmem:[#allocation8 + $0x18] sm:$0xff]
    %v221 = vld [vmem:[#allocation8 + $0x20] sm:$0xff]
    %v222 = vld [vmem:[#allocation8 + $0x28] sm:$0xff]
    %v223 = vld [vmem:[#allocation8 + $0x30] sm:$0xff]
    %v224 = vld [vmem:[#allocation8 + $0x38] sm:$0xff]
    %v225 = vld [vmem:[#allocation8 + $0x40] sm:$0xff]
    %v226 = vld [vmem:[#allocation8 + $0x48] sm:$0xff]
    %v227 = vld [vmem:[#allocation8 + $0x50] sm:$0xff]
    %v228 = vld [vmem:[#allocation8 + $0x58] sm:$0xff]
    %v229 = vld [vmem:[#allocation8 + $0x60] sm:$0xff]
    %v230 = vld [vmem:[#allocation8 + $0x68] sm:$0xff]
    %v231 = vld [vmem:[#allocation8 + $0x70] sm:$0xff]
    %v232 = vld [vmem:[#allocation8 + $0x78] sm:$0xff]
    %v233 = vld [vmem:[#allocation8 + $0x80] sm:$0xff]
    %v234 = vld [vmem:[#allocation8 + $0x88] sm:$0xff]
    %v235 = vld [vmem:[#allocation8 + $0x90] sm:$0xff]
    %v236 = vld [vmem:[#allocation8 + $0x98] sm:$0xff]
    %v237 = vld [vmem:[#allocation8 + $0xa0] sm:$0xff]
    %v238 = vld [vmem:[#allocation8 + $0xa8] sm:$0xff]
    %v239 = vld [vmem:[#allocation8 + $0xb0] sm:$0xff]
    %v240 = vld [vmem:[#allocation8 + $0xb8] sm:$0xff]
    %v241 = vld [vmem:[#allocation8 + $0xc0] sm:$0xff]
    %v242 = vld [vmem:[#allocation8 + $0xc8] sm:$0xff]
    %v243 = vld [vmem:[#allocation8 + $0xd0] sm:$0xff]
    %v244 = vld [vmem:[#allocation8 + $0xd8] sm:$0xff]
    %v245 = vld [vmem:[#allocation8 + $0xe0] sm:$0xff]
    %v246 = vld [vmem:[#allocation8 + $0xe8] sm:$0xff]
    %v247 = vld [vmem:[#allocation8 + $0xf0] sm:$0xff]
    %v248 = vld [vmem:[#allocation8 + $0xf8] sm:$0xff]
    %v249 = vld [vmem:[#allocation8 + $0x100] sm:$0xff]
    %v250 = vld [vmem:[#allocation8 + $0x108] sm:$0xff]
    %v251 = vld [vmem:[#allocation8 + $0x110] sm:$0xff]
    %v252 = vld [vmem:[#allocation8 + $0x118] sm:$0xff]
    %v253 = vld [vmem:[#allocation8 + $0x120] sm:$0xff]
    %v254 = vld [vmem:[#allocation8 + $0x128] sm:$0xff]
    %v255 = vld [vmem:[#allocation8 + $0x130] sm:$0xff]
    %v256 = vld [vmem:[#allocation8 + $0x138] sm:$0xff]
    %v257 = vld [vmem:[#allocation8 + $0x140] sm:$0xff]
    %v258 = vld [vmem:[#allocation8 + $0x148] sm:$0xff]
    %v259 = vld [vmem:[#allocation8 + $0x150] sm:$0xff]
    %v260 = vld [vmem:[#allocation8 + $0x158] sm:$0xff]
    %v261 = vld [vmem:[#allocation8 + $0x160] sm:$0xff]
    %v262 = vld [vmem:[#allocation8 + $0x168] sm:$0xff]
    %v263 = vld [vmem:[#allocation8 + $0x170] sm:$0xff]
    %v264 = vld [vmem:[#allocation8 + $0x178] sm:$0xff]
    %v265 = vld [vmem:[#allocation8 + $0x180] sm:$0xff]
    %v266 = vld [vmem:[#allocation8 + $0x188] sm:$0xff]
    %v267 = vld [vmem:[#allocation8 + $0x190] sm:$0xff]
    %v268 = vld [vmem:[#allocation8 + $0x198] sm:$0xff]
    %v269 = vld [vmem:[#allocation8 + $0x1a0] sm:$0xff]
    %v270 = vld [vmem:[#allocation8 + $0x1a8] sm:$0xff]
    %v271 = vld [vmem:[#allocation8 + $0x1b0] sm:$0xff]
    %v272 = vld [vmem:[#allocation8 + $0x1b8] sm:$0xff]
    %v273 = vld [vmem:[#allocation8 + $0x1c0] sm:$0xff]
    %v274 = vld [vmem:[#allocation8 + $0x1c8] sm:$0xff]
    %v275 = vld [vmem:[#allocation8 + $0x1d0] sm:$0xff]
    %v276 = vld [vmem:[#allocation8 + $0x1d8] sm:$0xff]
    %v277 = vld [vmem:[#allocation8 + $0x1e0] sm:$0xff]
    %v278 = vld [vmem:[#allocation8 + $0x1e8] sm:$0xff]
    %v279 = vld [vmem:[#allocation8 + $0x1f0] sm:$0xff]
    %v280 = vld [vmem:[#allocation8 + $0x1f8] sm:$0xff]
    %v281 = vld [vmem:[%s4] sm:$0x1]
    %v283 = vperm.slane %v281, 0
    %285 = vmatpush.msra.mxu0 %v232
    %286 = vmatpush.msra.mxu0 %v231
    %287 = vmatpush.msra.mxu0 %v230
    %288 = vmatpush.msra.mxu0 %v229
    %289 = vmatpush.msra.mxu0 %v228
    %290 = vmatpush.msra.mxu0 %v227
    %291 = vmatpush.msra.mxu0 %v226
    %292 = vmatpush.msra.mxu0 %v225
    %293 = vmatpush.msra.mxu0 %v224
    %294 = vmatpush.msra.mxu0 %v223
    %295 = vmatpush.msra.mxu0 %v222
    %296 = vmatpush.msra.mxu0 %v221
    %297 = vmatpush.msra.mxu0 %v220
    %298 = vmatpush.msra.mxu0 %v219
    %299 = vmatpush.msra.mxu0 %v218
    %300 = vmatpush.msra.mxu0 %v217
    %301 = vmatmul.f32.gmra.mxu0 %v209
    %v302 = vpop.f32.mrf.mxu0
    %v303 = vadd.f32 %v283, %v302
    %304 = vmatmul.f32.gmra.mxu0 %v213
    %v305 = vpop.f32.mrf.mxu0
    %v306 = vadd.f32 %v283, %v305
    %307 = vdwg.mxu0
    %308 = vmatpush.msra.mxu0 %v248
    %309 = vmatpush.msra.mxu0 %v247
    %310 = vmatpush.msra.mxu0 %v246
    %311 = vmatpush.msra.mxu0 %v245
    %312 = vmatpush.msra.mxu0 %v244
    %313 = vmatpush.msra.mxu0 %v243
    %314 = vmatpush.msra.mxu0 %v242
    %315 = vmatpush.msra.mxu0 %v241
    %316 = vmatpush.msra.mxu0 %v240
    %317 = vmatpush.msra.mxu0 %v239
    %318 = vmatpush.msra.mxu0 %v238
    %319 = vmatpush.msra.mxu0 %v237
    %320 = vmatpush.msra.mxu0 %v236
    %321 = vmatpush.msra.mxu0 %v235
    %322 = vmatpush.msra.mxu0 %v234
    %323 = vmatpush.msra.mxu0 %v233
    %324 = vmatmul.f32.gmra.mxu0 %v210
    %v325 = vpop.f32.mrf.mxu0
    %v326 = vadd.f32 %v303, %v325
    %327 = vmatmul.f32.gmra.mxu0 %v214
    %v328 = vpop.f32.mrf.mxu0
    %v329 = vadd.f32 %v306, %v328
    %330 = vdwg.mxu0
    %331 = vmatpush.msra.mxu0 %v264
    %332 = vmatpush.msra.mxu0 %v263
    %333 = vmatpush.msra.mxu0 %v262
    %334 = vmatpush.msra.mxu0 %v261
    %335 = vmatpush.msra.mxu0 %v260
    %336 = vmatpush.msra.mxu0 %v259
    %337 = vmatpush.msra.mxu0 %v258
    %338 = vmatpush.msra.mxu0 %v257
    %339 = vmatpush.msra.mxu0 %v256
    %340 = vmatpush.msra.mxu0 %v255
    %341 = vmatpush.msra.mxu0 %v254
    %342 = vmatpush.msra.mxu0 %v253
    %343 = vmatpush.msra.mxu0 %v252
    %344 = vmatpush.msra.mxu0 %v251
    %345 = vmatpush.msra.mxu0 %v250
    %346 = vmatpush.msra.mxu0 %v249
    %347 = vmatmul.f32.gmra.mxu0 %v211
    %v348 = vpop.f32.mrf.mxu0
    %v349 = vadd.f32 %v326, %v348
    %350 = vmatmul.f32.gmra.mxu0 %v215
    %v351 = vpop.f32.mrf.mxu0
    %v352 = vadd.f32 %v329, %v351
    %353 = vdwg.mxu0
    %354 = vmatpush.msra.mxu0 %v280
    %355 = vmatpush.msra.mxu0 %v279
    %356 = vmatpush.msra.mxu0 %v278
    %357 = vmatpush.msra.mxu0 %v277
    %358 = vmatpush.msra.mxu0 %v276
    %359 = vmatpush.msra.mxu0 %v275
    %360 = vmatpush.msra.mxu0 %v274
    %361 = vmatpush.msra.mxu0 %v273
    %362 = vmatpush.msra.mxu0 %v272
    %363 = vmatpush.msra.mxu0 %v271
    %364 = vmatpush.msra.mxu0 %v270
    %365 = vmatpush.msra.mxu0 %v269
    %366 = vmatpush.msra.mxu0 %v268
    %367 = vmatpush.msra.mxu0 %v267
    %368 = vmatpush.msra.mxu0 %v266
    %369 = vmatpush.msra.mxu0 %v265
    %370 = vmatmul.f32.gmra.mxu0 %v212
    %v371 = vpop.f32.mrf.mxu0
    %v372 = vadd.f32 %v349, %v371
    %373 = vmatmul.f32.gmra.mxu0 %v216
    %v374 = vpop.f32.mrf.mxu0
    %v375 = vadd.f32 %v352, %v374
    %376 = vdwg.mxu0
    %v377 = vlaneseq
    %v378 = vand.u32 %v377, 127
    %vm379 = vcmp.lt.s32.totalorder %v378, 4
    %vm380 = vcmp.ge.s32.totalorder %v378, 16
    %vm381 = vcmp.lt.s32.totalorder %v378, 28
    %vm382 = vmand %vm380, %vm381
    %v383 = vsel %vm379, %v372, -1e+30
    %v384 = vsel %vm379, %v375, -1e+30
    %385 = vmax.xlane.f32.xlu0 %v383
    %v386 = vpop.xlane.xlu0 %385
    %387 = vmax.xlane.f32.xlu0 %v384
    %v388 = vpop.xlane.xlu0 %387
    %v389 = vsub.f32 %v372, %v386
    %v390 = vsub.f32 %v375, %v388
    %v391 = vmul.f32 %v389, 1.442695
    %v392 = vpow.pop %v391
    %v393 = vmul.f32 %v390, 1.442695
    %v394 = vpow.pop %v393
    %v395 = vsel %vm379, %v392, 0.0
    %v396 = vsel %vm379, %v394, 0.0
    %397 = vadd.xlane.f32.xlu0 %v395
    %v398 = vpop.xlane.xlu0 %397
    %399 = vadd.xlane.f32.xlu0 %v396
    %v400 = vpop.xlane.xlu0 %399
    %v401 = vrcp.pop %v398
    %v402 = vmul.f32 %v398, %v401
    %v403 = vsub.f32 1.0, %v402
    %v404 = vmul.f32 %v401, %v403
    %v405 = vadd.f32 %v401, %v404
    %vm406 = vweird.f32 %v398
    %vm407 = vweird.f32 %v401
    %vm408 = vmor %vm406, %vm407
    %v409 = vsel %vm408, %v401, %v405
    %v410 = vand.u32 2147483647, %v398
    %vm411 = vcmp.eq.f32.partialorder %v410, 8.507059e+37
    %v412 = vand.u32 %v398, 2147483648
    %v413 = vor.u32 1.1754944e-38, %v412
    %v414 = vsel %vm411, %v413, %v409
    %v415 = vmul.f32 %v395, %v414
    %v416 = vrcp.pop %v400
    %v417 = vmul.f32 %v400, %v416
    %v418 = vsub.f32 1.0, %v417
    %v419 = vmul.f32 %v416, %v418
    %v420 = vadd.f32 %v416, %v419
    %vm421 = vweird.f32 %v400
    %vm422 = vweird.f32 %v416
    %vm423 = vmor %vm421, %vm422
    %v424 = vsel %vm423, %v416, %v420
    %v425 = vand.u32 2147483647, %v400
    %vm426 = vcmp.eq.f32.partialorder %v425, 8.507059e+37
    %v427 = vand.u32 %v400, 2147483648
    %v428 = vor.u32 1.1754944e-38, %v427
    %v429 = vsel %vm426, %v428, %v424
    %v430 = vmul.f32 %v396, %v429
    %v431 = vtanh.pop %v372
    %v432 = vtanh.pop %v375
    %v433 = vmul.f32 %v372, 1.442695
    %v434 = vpow.pop %v433
    %v435 = vmul.f32 %v375, 1.442695
    %v436 = vpow.pop %v435
    %v437 = vsel %vm382, %v434, %v431
    %v438 = vsel %vm382, %v436, %v432
    %v439 = vsel %vm379, %v415, %v437
    %v440 = vsel %vm379, %v430, %v438
    %441 = vst [vmem:[#allocation10] sm:$0xff] %v439
    %442 = vst [vmem:[#allocation10 + $0x8] sm:$0xff] %v440
    // Predicated region
    $region38: #{tpu_custom_call.1} parent=1 // pred_check
      _
    $region39: #{tpu_custom_call.1} parent=1 // pred_check_branch
      %444 = sbr.rel (0) target = $region41
    $region40: #{tpu_custom_call.1} parent=1 // pred_region
      %446 = vsyncadd [#allocation4], 0
      %s447 = sshll.u32 [#allocation10], 4
      %s448 = int_to_ptr.vmem [resolvable:$true] %s447
      %s449 = sshll.u32 %s5, 4
      %s450 = int_to_ptr.hbm [resolvable:$true] %s449
      %455 = dma.vmem_to_hbm [thread:$0]  %s448, 256, %s450, [#allocation4], 128, 128, 8
    $region41: #{tpu_custom_call.1} parent=1 // pred_fallthru
      _
    // Predicated region
    $region42: #{tpu_custom_call.1} parent=1 // pred_check
      _
    $region43: #{tpu_custom_call.1} parent=1 // pred_check_branch
      %457 = sbr.rel (0) target = $region45
    $region44: #{tpu_custom_call.1} parent=1 // pred_region
      %459 = dma.done [#allocation4], 256
    $region45: #{tpu_custom_call.1} parent=1 // pred_fallthru
      _
    %460 = vsyncpa [#allocation3], 1
    %461 = vsyncpa [#allocation6], 1
    %462 = vsyncpa [#allocation9], 1
    %463 = vsyncpa [#allocation4], 1

</llo_original>
